<compile_context>
chip_gen: v5e
topology: v5e:2x2
jax: 0.10.0
libtpu: 0.0.40
codegen_flags: <defaults>
</compile_context>

<pallas_src>
import jax
import jax.numpy as jnp
from jax.experimental import pallas as pl
from jax.experimental.pallas import tpu as pltpu

LANE = 128


def _round_up(x, m):
    return (x + m - 1) // m * m


# ----------------------------- Pallas kernel ------------------------------- #
def gcn_relu_kernel(a_ref, x_ref, w_ref, b_ref, o_ref):
    """relu(GCNConv) on one row tile of nodes.

    a_ref: [TM, Np]    bf16  normalized-adjacency row slab (streamed per tile)
    x_ref: [Np, Hin]   bf16  all node features (resident across the grid)
    w_ref: [Hin, Hout] bf16  layer weight (resident)
    b_ref: [1, Hout]   f32   layer bias (resident)
    o_ref: [TM, Hout]  f32   output row tile

    Computes relu((A_tile @ X) @ W + b)  ==  relu(A_tile @ (X @ W) + b).
    """
    agg = jnp.dot(a_ref[...], x_ref[...],
                  preferred_element_type=jnp.float32)           # [TM, Hin] f32
    hw = jnp.dot(agg.astype(jnp.bfloat16), w_ref[...],
                 preferred_element_type=jnp.float32)            # [TM, Hout] f32
    o_ref[...] = jnp.maximum(hw + b_ref[...], 0.0)


def gcn_relu(a_bf16, x_bf16, w_bf16, b_f32, *, tm):
    """Row-tiled relu(A_hat @ (X @ W) + b) over all (padded) nodes."""
    Np = a_bf16.shape[0]
    Hin = x_bf16.shape[1]
    Hout = w_bf16.shape[1]
    assert Np % tm == 0

    return pl.pallas_call(
        gcn_relu_kernel,
        out_shape=jax.ShapeDtypeStruct((Np, Hout), jnp.float32),
        grid=(Np // tm,),
        in_specs=[
            pl.BlockSpec((tm, Np), lambda i: (i, 0)),     # A row slab: streamed
            pl.BlockSpec((Np, Hin), lambda i: (0, 0)),    # X: resident
            pl.BlockSpec((Hin, Hout), lambda i: (0, 0)),  # W: resident
            pl.BlockSpec((1, Hout), lambda i: (0, 0)),    # b: resident
        ],
        out_specs=pl.BlockSpec((tm, Hout), lambda i: (i, 0)),
        compiler_params=pltpu.CompilerParams(
            dimension_semantics=("parallel",),            # megacore on v7x
            vmem_limit_bytes=32 * 1024 * 1024,
        ),
    )(a_bf16, x_bf16, w_bf16, b_f32)


# ------------------------------- Glue --------------------------------------- #
def normalized_adjacency(edge_index, num_nodes):
    """Dense D^{-1/2} (A + I) D^{-1/2} (PyG GCNConv default normalization)."""
    A = jnp.zeros((num_nodes, num_nodes), jnp.float32)
    A = A.at[edge_index[0], edge_index[1]].set(1.0)
    A = A + jnp.eye(num_nodes, dtype=jnp.float32)
    deg = jnp.sum(A, axis=1)
    d_inv_sqrt = jnp.where(deg > 0, 1.0 / jnp.sqrt(deg), 0.0)
    return A * d_inv_sqrt[:, None] * d_inv_sqrt[None, :]
    # TODO(synk): for genuinely sparse graphs, replace this dense O(N^2)
    # aggregation with a scalar-prefetch neighbor-gather kernel.


def attribute_decoder_forward(x, edge_index, params, *, tm=128):
    """AttributeDecoder.forward (eval mode). x: [N, nhid] -> [N, nfeat]."""
    N, nhid = x.shape
    nfeat = params["w2"].shape[1]

    Np = _round_up(max(N, tm), tm)       # tm is a multiple of 128 -> lane-dense
    Hp = _round_up(nhid, LANE)
    Fp = _round_up(nfeat, LANE)

    a_norm = normalized_adjacency(edge_index, N)
    a_pad = jnp.zeros((Np, Np), jnp.float32).at[:N, :N].set(a_norm)
    x_pad = jnp.zeros((Np, Hp), jnp.float32).at[:N, :nhid].set(x)
    w1 = jnp.zeros((Hp, Hp), jnp.float32).at[:nhid, :nhid].set(params["w1"])
    b1 = jnp.zeros((1, Hp), jnp.float32).at[0, :nhid].set(params["b1"])
    w2 = jnp.zeros((Hp, Fp), jnp.float32).at[:nhid, :nfeat].set(params["w2"])
    b2 = jnp.zeros((1, Fp), jnp.float32).at[0, :nfeat].set(params["b2"])

    a_bf = a_pad.astype(jnp.bfloat16)

    # gc1 + ReLU; F.dropout(training=False) is identity -> no kernel work.
    h = gcn_relu(a_bf, x_pad.astype(jnp.bfloat16),
                 w1.astype(jnp.bfloat16), b1, tm=tm)
    # gc2 + ReLU
    out = gcn_relu(a_bf, h.astype(jnp.bfloat16),
                   w2.astype(jnp.bfloat16), b2, tm=tm)

    return out[:N, :nfeat]               # strip node / feature padding


def attribute_decoder_reference(x, edge_index, params):
    """Pure-JAX f32 reference (matches the PyTorch module in eval mode)."""
    A = normalized_adjacency(edge_index, x.shape[0])
    h = jnp.maximum(A @ (x @ params["w1"]) + params["b1"], 0.0)
    return jnp.maximum(A @ (h @ params["w2"]) + params["b2"], 0.0)


# --------------------------------- Main -------------------------------------- #
if __name__ == "__main__":
    N, NHID, NFEAT, TM = 256, 32, 32, 128

    key = jax.random.PRNGKey(0)
    k_x, k_w1, k_b1, k_w2, k_b2 = jax.random.split(key, 5)

    # Node embeddings fed to the AttributeDecoder: [N, nhid].
    x = jax.random.normal(k_x, (N, NHID), jnp.float32)

    # Deterministic symmetric ring graph: each node connected to i±1, i±2.
    src, dst = [], []
    for i in range(N):
        for d in (1, 2):
            j = (i + d) % N
            src += [i, j]
            dst += [j, i]
    edge_index = jnp.array([src, dst], dtype=jnp.int32)   # [2, 4N]

    def glorot(k, fan_in, fan_out):
        bound = (6.0 / (fan_in + fan_out)) ** 0.5
        return jax.random.uniform(k, (fan_in, fan_out), jnp.float32,
                                  minval=-bound, maxval=bound)

    params = {
        "w1": glorot(k_w1, NHID, NHID),
        "b1": 0.1 * jax.random.normal(k_b1, (NHID,), jnp.float32),
        "w2": glorot(k_w2, NHID, NFEAT),
        "b2": 0.1 * jax.random.normal(k_b2, (NFEAT,), jnp.float32),
    }

    out = attribute_decoder_forward(x, edge_index, params, tm=TM)
    jax.block_until_ready(out)

    ref = attribute_decoder_reference(x, edge_index, params)
    assert out.shape == (N, NFEAT)
    max_err = float(jnp.max(jnp.abs(out - ref)))
    assert jnp.allclose(out, ref, atol=5e-2, rtol=5e-2), max_err

    print("KERNEL_OK")
</pallas_src>

<mosaic_0001>
module attributes {stable_mosaic.version = 11 : i64} {
  func.func @gcn_relu_kernel(%arg0: i32, %arg1: memref<128x256xbf16, #tpu.memory_space<vmem>>, %arg2: memref<256x128xbf16, #tpu.memory_space<vmem>>, %arg3: memref<128x128xbf16, #tpu.memory_space<vmem>>, %arg4: memref<1x128xf32, #tpu.memory_space<vmem>>, %arg5: memref<128x128xf32, #tpu.memory_space<vmem>>) attributes {dimension_semantics = [#tpu.dimension_semantics<parallel>], iteration_bounds = array<i64: 2>, scalar_prefetch = 0 : i64, scratch_operands = 0 : i64, tpu.core_type = #tpu.core_type<tc>, window_params = [{transform_indices = @transform_0, window_bounds = array<i64: 128, 256>}, {pipeline_mode = #tpu.pipeline_mode<synchronous>, transform_indices = @transform_1, window_bounds = array<i64: 256, 128>}, {pipeline_mode = #tpu.pipeline_mode<synchronous>, transform_indices = @transform_2, window_bounds = array<i64: 128, 128>}, {pipeline_mode = #tpu.pipeline_mode<synchronous>, transform_indices = @transform_3, window_bounds = array<i64: 1, 128>}, {transform_indices = @transform_4, window_bounds = array<i64: 128, 128>}]} {
    %c0 = arith.constant 0 : index
    %c0_0 = arith.constant 0 : index
    %0 = vector.load %arg1[%c0, %c0_0] : memref<128x256xbf16, #tpu.memory_space<vmem>>, vector<128x256xbf16>
    %c0_1 = arith.constant 0 : index
    %c0_2 = arith.constant 0 : index
    %1 = vector.load %arg2[%c0_1, %c0_2] : memref<256x128xbf16, #tpu.memory_space<vmem>>, vector<256x128xbf16>
    %cst = arith.constant dense<0.000000e+00> : vector<128x128xf32>
    %2 = tpu.matmul %0, %1, %cst {dimension_numbers = #tpu.dot_dimension_numbers<[1], [0], [0], [1], [0, 0, 1, 1], [], []>} : vector<128x256xbf16>, vector<256x128xbf16>, vector<128x128xf32> -> vector<128x128xf32>
    %3 = arith.truncf %2 : vector<128x128xf32> to vector<128x128xbf16>
    %c0_3 = arith.constant 0 : index
    %c0_4 = arith.constant 0 : index
    %4 = vector.load %arg3[%c0_3, %c0_4] : memref<128x128xbf16, #tpu.memory_space<vmem>>, vector<128x128xbf16>
    %cst_5 = arith.constant dense<0.000000e+00> : vector<128x128xf32>
    %5 = tpu.matmul %3, %4, %cst_5 {dimension_numbers = #tpu.dot_dimension_numbers<[1], [0], [0], [1], [0, 0, 1, 1], [], []>} : vector<128x128xbf16>, vector<128x128xbf16>, vector<128x128xf32> -> vector<128x128xf32>
    %c0_6 = arith.constant 0 : index
    %c0_7 = arith.constant 0 : index
    %6 = vector.load %arg4[%c0_6, %c0_7] : memref<1x128xf32, #tpu.memory_space<vmem>>, vector<1x128xf32>
    %7 = vector.broadcast %6 : vector<1x128xf32> to vector<128x128xf32>
    %8 = arith.addf %5, %7 : vector<128x128xf32>
    %cst_8 = arith.constant 0.000000e+00 : f32
    %9 = vector.broadcast %cst_8 : f32 to vector<128x128xf32>
    %10 = arith.maximumf %8, %9 : vector<128x128xf32>
    %c0_9 = arith.constant 0 : index
    %c0_10 = arith.constant 0 : index
    %11 = vector.load %arg5[%c0_9, %c0_10] : memref<128x128xf32, #tpu.memory_space<vmem>>, vector<128x128xf32>
    tpu.vector_store %arg5[%c0_9, %c0_10], %10 {strides = array<i32>} : memref<128x128xf32, #tpu.memory_space<vmem>>, vector<128x128xf32>,
    return
  }
  func.func @transform_0(%arg0: i32) -> (i32, i32) {
    %c0_i32 = arith.constant 0 : i32
    %c0_i32_0 = arith.constant 0 : i32
    return %arg0, %c0_i32 : i32, i32
  }
  func.func @transform_1(%arg0: i32) -> (i32, i32) {
    %c0_i32 = arith.constant 0 : i32
    %c0_i32_0 = arith.constant 0 : i32
    %c0_i32_1 = arith.constant 0 : i32
    return %c0_i32, %c0_i32_0 : i32, i32
  }
  func.func @transform_2(%arg0: i32) -> (i32, i32) {
    %c0_i32 = arith.constant 0 : i32
    %c0_i32_0 = arith.constant 0 : i32
    %c0_i32_1 = arith.constant 0 : i32
    return %c0_i32, %c0_i32_0 : i32, i32
  }
  func.func @transform_3(%arg0: i32) -> (i32, i32) {
    %c0_i32 = arith.constant 0 : i32
    %c0_i32_0 = arith.constant 0 : i32
    %c0_i32_1 = arith.constant 0 : i32
    return %c0_i32, %c0_i32_0 : i32, i32
  }
  func.func @transform_4(%arg0: i32) -> (i32, i32) {
    %c0_i32 = arith.constant 0 : i32
    %c0_i32_0 = arith.constant 0 : i32
    return %arg0, %c0_i32 : i32, i32
  }
}

</mosaic_0001>

<llo_original>
// kernel: tpu_custom_call.1
$region0: #{tpu_custom_call.1}
  #allocation0 [shape = 'u32[]', space=smem, size = 0x4, offset = 0x4, fixed_abs, tag = 'smem constant byte address 0x4 - core index']
  #allocation1 [shape = 'u32[72,128]{1,0:T(1,128)}', space=vmem, size = 0x9000, scoped, tag = 'internal scratch']
  %s0 = inlined_call_operand.hbm [shape: bf16[256,256], index: 0, kind: input, shape index: {}]
  %s1 = inlined_call_operand.hbm [shape: bf16[256,128], index: 1, kind: input, shape index: {}]
  %s2 = inlined_call_operand.hbm [shape: bf16[128,128], index: 2, kind: input, shape index: {}]
  %s3 = inlined_call_operand.vmem [shape: f32[1,128], index: 3, kind: input, shape index: {}]
  %s4 = inlined_call_operand.hbm [shape: f32[256,128], index: 4, kind: output, shape index: {}]
  %s5 = sld [smem:[#allocation0]]
  $region61: #{tpu_custom_call.1} parent=0
    _
  %s7 = ssub.s32 1, %s5
  %s8 = scalar_select 0, %s7, %s5
  $region1: #{tpu_custom_call.1} parent=0
    #allocation2 [shape = 'u8[131072]{0}', space=vmem, size = 0x20000, scoped, tag = 'input window, operand 0']
    #allocation3 [shape = 's32[2]{0}', space=sflag, size = 0x8, scoped, tag = 'scoped memory for tpu_custom_call.1']
    #allocation4 [shape = 's32[2]{0}', space=sflag, size = 0x8, scoped, tag = 'scoped memory for tpu_custom_call.1']
    #allocation5 [shape = 'u8[65536]{0}', space=vmem, size = 0x10000, scoped, tag = 'input window, operand 1, single buffered']
    #allocation6 [shape = 's32[1]{0}', space=sflag, size = 0x4, scoped, tag = 'scoped memory for tpu_custom_call.1']
    #allocation7 [shape = 'u8[32768]{0}', space=vmem, size = 0x8000, scoped, tag = 'input window, operand 2, single buffered']
    #allocation8 [shape = 'u8[131072]{0}', space=vmem, size = 0x20000, scoped, tag = 'output window, operand 0']
    %9 = vsyncpa [#allocation3], 0
    %s10 = scalar_lea.sflag [#allocation3], 1
    %11 = vsyncpa %s10, 0
    %12 = vsyncpa [#allocation6], 0
    %13 = vsyncpa [#allocation4], 0
    %s14 = scalar_lea.sflag [#allocation4], 1
    %15 = vsyncpa %s14, 0
    loop: start=0, step=1, limit=4
    $region2: #{tpu_custom_call.1} parent=1 // loop_pre_header
      _
    $region3: #{tpu_custom_call.1} parent=1 // loop_header
      %s17 = sphi 0, %s21
      %p18 = scmp.ge.s32.totalorder %s17, 4
      %s27 = sphi 0, %s29
      %s30 = sphi 0, %s27
      %s31 = sphi 0, %s30
      %s47 = sphi 0, %s31
      %s51 = sphi 0, %s51
      %s53 = sphi 0, %s51
      %s54 = sphi 0, %s53
      %s68 = sphi 0, %s54
      %s72 = sphi 0, %s72
      %s74 = sphi 0, %s72
      %s75 = sphi 0, %s74
      %s89 = sphi 0, %s75
      %s93 = sphi 0, %s93
      %s95 = sphi 0, %s93
      %s96 = sphi 0, %s95
      %s110 = sphi 0, %s96
      %s116 = sphi 0, %s118
      %s119 = sphi 0, %s116
      %s120 = sphi 0, %s119
      %s136 = sphi 0, %s120
    $region4: #{tpu_custom_call.1} parent=1 // loop_header_branch
      %20 = sbr.rel (%p18) target = $region8
    $region5: #{tpu_custom_call.1} parent=1 // loop_body
      %s22 = ssub.s32 %s17, 1
      %s23 = ssub.s32 %s17, 2
      %s24 = sadd.s32 %s17, 1
      %s25 = ssub.s32 %s17, %s24
      %p26 = scmp.eq.s32.totalorder %s25, 0
      %s28 = sadd.s32 %s27, 1
      %s29 = scalar_select %p26, %s27, %s28
      %p32 = pneg %p26
      %p33 = scmp.eq.s32.totalorder %s17, 1
      %p34 = por %p32, %p33
      %p35 = scmp.ne.s32.totalorder %s27, %s30
      %p36 = scmp.eq.s32.totalorder %s17, 0
      %p37 = por %p35, %p36
      %p38 = scmp.ne.s32.totalorder %s27, %s30
      %p39 = scmp.eq.s32.totalorder %s22, 1
      %p40 = por %p38, %p39
      %p41 = scmp.ne.s32.totalorder %s30, %s31
      %p42 = scmp.eq.s32.totalorder %s22, 0
      %p43 = por %p41, %p42
      %p44 = scmp.ne.s32.totalorder %s30, %s31
      %p45 = scmp.eq.s32.totalorder %s23, 1
      %p46 = por %p44, %p45
      %p48 = scmp.ne.s32.totalorder %s31, %s47
      %p49 = scmp.eq.s32.totalorder %s23, 0
      %p50 = por %p48, %p49
      %s52 = sadd.s32 %s51, 1
      %p55 = scmp.eq.s32.totalorder %s17, 1
      %p56 = scmp.ne.s32.totalorder %s51, %s53
      %p57 = scmp.eq.s32.totalorder %s17, 0
      %p58 = por %p56, %p57
      %p59 = scmp.ne.s32.totalorder %s51, %s53
      %p60 = scmp.eq.s32.totalorder %s22, 1
      %p61 = por %p59, %p60
      %p62 = scmp.ne.s32.totalorder %s53, %s54
      %p63 = scmp.eq.s32.totalorder %s22, 0
      %p64 = por %p62, %p63
      %p65 = scmp.ne.s32.totalorder %s53, %s54
      %p66 = scmp.eq.s32.totalorder %s23, 1
      %p67 = por %p65, %p66
      %p69 = scmp.ne.s32.totalorder %s54, %s68
      %p70 = scmp.eq.s32.totalorder %s23, 0
      %p71 = por %p69, %p70
      %s73 = sadd.s32 %s72, 1
      %p76 = scmp.eq.s32.totalorder %s17, 1
      %p77 = scmp.ne.s32.totalorder %s72, %s74
      %p78 = scmp.eq.s32.totalorder %s17, 0
      %p79 = por %p77, %p78
      %p80 = scmp.ne.s32.totalorder %s72, %s74
      %p81 = scmp.eq.s32.totalorder %s22, 1
      %p82 = por %p80, %p81
      %p83 = scmp.ne.s32.totalorder %s74, %s75
      %p84 = scmp.eq.s32.totalorder %s22, 0
      %p85 = por %p83, %p84
      %p86 = scmp.ne.s32.totalorder %s74, %s75
      %p87 = scmp.eq.s32.totalorder %s23, 1
      %p88 = por %p86, %p87
      %p90 = scmp.ne.s32.totalorder %s75, %s89
      %p91 = scmp.eq.s32.totalorder %s23, 0
      %p92 = por %p90, %p91
      %s94 = sadd.s32 %s93, 1
      %p97 = scmp.eq.s32.totalorder %s17, 1
      %p98 = scmp.ne.s32.totalorder %s93, %s95
      %p99 = scmp.eq.s32.totalorder %s17, 0
      %p100 = por %p98, %p99
      %p101 = scmp.ne.s32.totalorder %s93, %s95
      %p102 = scmp.eq.s32.totalorder %s22, 1
      %p103 = por %p101, %p102
      %p104 = scmp.ne.s32.totalorder %s95, %s96
      %p105 = scmp.eq.s32.totalorder %s22, 0
      %p106 = por %p104, %p105
      %p107 = scmp.ne.s32.totalorder %s95, %s96
      %p108 = scmp.eq.s32.totalorder %s23, 1
      %p109 = por %p107, %p108
      %p111 = scmp.ne.s32.totalorder %s96, %s110
      %p112 = scmp.eq.s32.totalorder %s23, 0
      %p113 = por %p111, %p112
      %s114 = ssub.s32 %s17, %s24
      %p115 = scmp.eq.s32.totalorder %s114, 0
      %s117 = sadd.s32 %s116, 1
      %s118 = scalar_select %p115, %s116, %s117
      %p121 = pneg %p115
      %p122 = scmp.eq.s32.totalorder %s17, 1
      %p123 = por %p121, %p122
      %p124 = scmp.ne.s32.totalorder %s116, %s119
      %p125 = scmp.eq.s32.totalorder %s17, 0
      %p126 = por %p124, %p125
      %p127 = scmp.ne.s32.totalorder %s116, %s119
      %p128 = scmp.eq.s32.totalorder %s22, 1
      %p129 = por %p127, %p128
      %p130 = scmp.ne.s32.totalorder %s119, %s120
      %p131 = scmp.eq.s32.totalorder %s22, 0
      %p132 = por %p130, %p131
      %p133 = scmp.ne.s32.totalorder %s119, %s120
      %p134 = scmp.eq.s32.totalorder %s23, 1
      %p135 = por %p133, %p134
      %p137 = scmp.ne.s32.totalorder %s120, %s136
      %p138 = scmp.eq.s32.totalorder %s23, 0
      %p139 = por %p137, %p138
      %p140 = scmp.le.s32.totalorder 1, %s17
      %p141 = scmp.lt.s32.totalorder %s17, 3
      %p142 = pnand %p140, %p141
      %p143 = pneg %p142
      // Predicated region
      $region9: #{tpu_custom_call.1} parent=5 // pred_check
        _
      $region10: #{tpu_custom_call.1} parent=5 // pred_check_branch
        %145 = sbr.rel (%p142) target = $region12
      $region11: #{tpu_custom_call.1} parent=5 // pred_region
        %s146 = ssub.s32 %s17, 1
        // Predicated region
        $region13: #{tpu_custom_call.1} parent=11 // pred_check
          %p147 = pneg %p64
        $region14: #{tpu_custom_call.1} parent=11 // pred_check_branch
          %149 = sbr.rel (%p147) target = $region16
        $region15: #{tpu_custom_call.1} parent=11 // pred_region
          %151 = vsyncadd [#allocation6], 0
          %s152 = sshll.u32 %s1, 4
          %s153 = int_to_ptr.hbm [resolvable:$true] %s152
          %s154 = sshll.u32 [#allocation5], 4
          %s155 = int_to_ptr.vmem [resolvable:$true] %s154
          %160 = dma.hbm_to_vmem [thread:$0]  %s153, 2048, %s155, [#allocation6], 64, 64, 4
        $region16: #{tpu_custom_call.1} parent=11 // pred_fallthru
          _
        // Predicated region
        $region17: #{tpu_custom_call.1} parent=11 // pred_check
          %p161 = pneg %p85
        $region18: #{tpu_custom_call.1} parent=11 // pred_check_branch
          %163 = sbr.rel (%p161) target = $region20
        $region19: #{tpu_custom_call.1} parent=11 // pred_region
          %165 = vsyncadd [#allocation6], 0
          %s166 = sshll.u32 %s2, 4
          %s167 = int_to_ptr.hbm [resolvable:$true] %s166
          %s168 = sshll.u32 [#allocation7], 4
          %s169 = int_to_ptr.vmem [resolvable:$true] %s168
          %174 = dma.hbm_to_vmem [thread:$0]  %s167, 1024, %s169, [#allocation6], 64, 64, 4
        $region20: #{tpu_custom_call.1} parent=11 // pred_fallthru
          _
        // Predicated region
        $region21: #{tpu_custom_call.1} parent=11 // pred_check
          %p175 = pneg %p106
        $region22: #{tpu_custom_call.1} parent=11 // pred_check_branch
          %177 = sbr.rel (%p175) target = $region24
        $region23: #{tpu_custom_call.1} parent=11 // pred_region
          _
        $region24: #{tpu_custom_call.1} parent=11 // pred_fallthru
          _
      $region12: #{tpu_custom_call.1} parent=5 // pred_fallthru
        _
      %p178 = scmp.lt.s32.totalorder %s17, 2
      // Predicated region
      $region25: #{tpu_custom_call.1} parent=5 // pred_check
        %p179 = pneg %p178
      $region26: #{tpu_custom_call.1} parent=5 // pred_check_branch
        %181 = sbr.rel (%p179) target = $region28
      $region27: #{tpu_custom_call.1} parent=5 // pred_region
        // Predicated region
        $region29: #{tpu_custom_call.1} parent=27 // pred_check
          %p182 = pneg %p37
        $region30: #{tpu_custom_call.1} parent=27 // pred_check_branch
          %184 = sbr.rel (%p182) target = $region32
        $region31: #{tpu_custom_call.1} parent=27 // pred_region
          %s185 = sand.u32 %s27, 1
          %s186 = scalar_lea.sflag [#allocation3], %s185
          %s187 = sand.u32 %s27, 1
          %s188 = smul.addr %s187, 128
          %s189 = scalar_lea.vmem [#allocation2], %s188
          %s190 = smul.u32 16, %s17
          %192 = vsyncadd %s186, 0
          %s193 = smul.addr %s190, 2
          %s194 = smul.addr %s193, 4
          %s195 = scalar_lea.hbm %s0, %s194
          %s196 = sshll.u32 %s195, 4
          %s197 = int_to_ptr.hbm [resolvable:$true] %s196
          %s198 = sshll.u32 %s189, 4
          %s199 = int_to_ptr.vmem [resolvable:$true] %s198
          %204 = dma.hbm_to_vmem [thread:$0]  %s197, 2048, %s199, %s186, 128, 128, 8
        $region32: #{tpu_custom_call.1} parent=27 // pred_fallthru
          _
      $region28: #{tpu_custom_call.1} parent=5 // pred_fallthru
        _
      %p205 = scmp.le.s32.totalorder 1, %s17
      %p206 = scmp.lt.s32.totalorder %s17, 3
      %p207 = pnand %p205, %p206
      %p208 = pneg %p207
      // Predicated region
      $region33: #{tpu_custom_call.1} parent=5 // pred_check
        _
      $region34: #{tpu_custom_call.1} parent=5 // pred_check_branch
        %210 = sbr.rel (%p207) target = $region36
      $region35: #{tpu_custom_call.1} parent=5 // pred_region
        %s211 = ssub.s32 %s17, 1
        %s212 = sand.u32 %s30, 1
        %s213 = scalar_lea.sflag [#allocation3], %s212
        %s214 = sand.u32 %s30, 1
        %s215 = smul.addr %s214, 128
        %s216 = scalar_lea.vmem [#allocation2], %s215
        // Predicated region
        $region37: #{tpu_custom_call.1} parent=35 // pred_check
          %p217 = pneg %p43
        $region38: #{tpu_custom_call.1} parent=35 // pred_check_branch
          %219 = sbr.rel (%p217) target = $region40
        $region39: #{tpu_custom_call.1} parent=35 // pred_region
          %221 = dma.done %s213, 2048
        $region40: #{tpu_custom_call.1} parent=35 // pred_fallthru
          _
        // Predicated region
        $region41: #{tpu_custom_call.1} parent=35 // pred_check
          %p222 = pneg %p64
        $region42: #{tpu_custom_call.1} parent=35 // pred_check_branch
          %224 = sbr.rel (%p222) target = $region44
        $region43: #{tpu_custom_call.1} parent=35 // pred_region
          %226 = dma.done [#allocation6], 2048
        $region44: #{tpu_custom_call.1} parent=35 // pred_fallthru
          _
        // Predicated region
        $region45: #{tpu_custom_call.1} parent=35 // pred_check
          %p227 = pneg %p85
        $region46: #{tpu_custom_call.1} parent=35 // pred_check_branch
          %229 = sbr.rel (%p227) target = $region48
        $region47: #{tpu_custom_call.1} parent=35 // pred_region
          %231 = dma.done [#allocation6], 1024
        $region48: #{tpu_custom_call.1} parent=35 // pred_fallthru
          _
        %s232 = sand.u32 %s30, 1
        %s233 = scalar_lea.sflag [#allocation3], %s232
        %s234 = sand.u32 %s30, 1
        %s235 = smul.addr %s234, 128
        %s236 = scalar_lea.vmem [#allocation2], %s235
        %p237 = pneg %p43
        %p238 = pneg %p40
        %p239 = pneg %p64
        %p240 = pneg %p61
        %p241 = pneg %p85
        %p242 = pneg %p82
        %p243 = pneg %p106
        %p244 = pneg %p103
        %p245 = pneg %p132
        %p246 = pneg %p129
        %s247 = sand.u32 %s119, 1
        %s248 = scalar_lea.sflag [#allocation4], %s247
        %s249 = sand.u32 %s119, 1
        %s250 = smul.addr %s249, 128
        %s251 = scalar_lea.vmem [#allocation8], %s250
        %s252 = smul.u32 16, %s22
        %s253 = smul.u32 16, %s22
        %v254 = vld [vmem:[%s216] sm:$0xff]
        %v255 = vld [vmem:[%s216 + $0x8] sm:$0xff]
        %v256 = vld [vmem:[%s216 + $0x10] sm:$0xff]
        %v257 = vld [vmem:[%s216 + $0x18] sm:$0xff]
        %v258 = vld [vmem:[%s216 + $0x20] sm:$0xff]
        %v259 = vld [vmem:[%s216 + $0x28] sm:$0xff]
        %v260 = vld [vmem:[%s216 + $0x30] sm:$0xff]
        %v261 = vld [vmem:[%s216 + $0x38] sm:$0xff]
        %v262 = vld [vmem:[%s216 + $0x40] sm:$0xff]
        %v263 = vld [vmem:[%s216 + $0x48] sm:$0xff]
        %v264 = vld [vmem:[%s216 + $0x50] sm:$0xff]
        %v265 = vld [vmem:[%s216 + $0x58] sm:$0xff]
        %v266 = vld [vmem:[%s216 + $0x60] sm:$0xff]
        %v267 = vld [vmem:[%s216 + $0x68] sm:$0xff]
        %v268 = vld [vmem:[%s216 + $0x70] sm:$0xff]
        %v269 = vld [vmem:[%s216 + $0x78] sm:$0xff]
        %v270 = vld [vmem:[#allocation5] sm:$0xf]
        %v271 = vld [vmem:[#allocation5 + $0x4] sm:$0xf]
        %v272 = vld [vmem:[#allocation5 + $0x8] sm:$0xf]
        %v273 = vld [vmem:[#allocation5 + $0xc] sm:$0xf]
        %v274 = vld [vmem:[#allocation5 + $0x10] sm:$0xf]
        %v275 = vld [vmem:[#allocation5 + $0x14] sm:$0xf]
        %v276 = vld [vmem:[#allocation5 + $0x18] sm:$0xf]
        %v277 = vld [vmem:[#allocation5 + $0x1c] sm:$0xf]
        %v278 = vld [vmem:[#allocation5 + $0x20] sm:$0xf]
        %v279 = vld [vmem:[#allocation5 + $0x24] sm:$0xf]
        %v280 = vld [vmem:[#allocation5 + $0x28] sm:$0xf]
        %v281 = vld [vmem:[#allocation5 + $0x2c] sm:$0xf]
        %v282 = vld [vmem:[#allocation5 + $0x30] sm:$0xf]
        %v283 = vld [vmem:[#allocation5 + $0x34] sm:$0xf]
        %v284 = vld [vmem:[#allocation5 + $0x38] sm:$0xf]
        %v285 = vld [vmem:[#allocation5 + $0x3c] sm:$0xf]
        %v286 = vld [vmem:[#allocation5 + $0x40] sm:$0xf]
        %v287 = vld [vmem:[#allocation5 + $0x44] sm:$0xf]
        %v288 = vld [vmem:[#allocation5 + $0x48] sm:$0xf]
        %v289 = vld [vmem:[#allocation5 + $0x4c] sm:$0xf]
        %v290 = vld [vmem:[#allocation5 + $0x50] sm:$0xf]
        %v291 = vld [vmem:[#allocation5 + $0x54] sm:$0xf]
        %v292 = vld [vmem:[#allocation5 + $0x58] sm:$0xf]
        %v293 = vld [vmem:[#allocation5 + $0x5c] sm:$0xf]
        %v294 = vld [vmem:[#allocation5 + $0x60] sm:$0xf]
        %v295 = vld [vmem:[#allocation5 + $0x64] sm:$0xf]
        %v296 = vld [vmem:[#allocation5 + $0x68] sm:$0xf]
        %v297 = vld [vmem:[#allocation5 + $0x6c] sm:$0xf]
        %v298 = vld [vmem:[#allocation5 + $0x70] sm:$0xf]
        %v299 = vld [vmem:[#allocation5 + $0x74] sm:$0xf]
        %v300 = vld [vmem:[#allocation5 + $0x78] sm:$0xf]
        %v301 = vld [vmem:[#allocation5 + $0x7c] sm:$0xf]
        %v318 = vunpack.c.l.b16 %v254
        %v319 = vunpack.c.h.b16 %v254
        %v320 = vunpack.c.l.b16 %v255
        %v321 = vunpack.c.h.b16 %v255
        %v322 = vunpack.c.l.b16 %v256
        %v323 = vunpack.c.h.b16 %v256
        %v324 = vunpack.c.l.b16 %v257
        %v325 = vunpack.c.h.b16 %v257
        %v326 = vunpack.c.l.b16 %v258
        %v327 = vunpack.c.h.b16 %v258
        %v328 = vunpack.c.l.b16 %v259
        %v329 = vunpack.c.h.b16 %v259
        %v330 = vunpack.c.l.b16 %v260
        %v331 = vunpack.c.h.b16 %v260
        %v332 = vunpack.c.l.b16 %v261
        %v333 = vunpack.c.h.b16 %v261
        %v334 = vunpack.c.l.b16 %v262
        %v335 = vunpack.c.h.b16 %v262
        %v336 = vunpack.c.l.b16 %v263
        %v337 = vunpack.c.h.b16 %v263
        %v338 = vunpack.c.l.b16 %v264
        %v339 = vunpack.c.h.b16 %v264
        %v340 = vunpack.c.l.b16 %v265
        %v341 = vunpack.c.h.b16 %v265
        %v342 = vunpack.c.l.b16 %v266
        %v343 = vunpack.c.h.b16 %v266
        %v344 = vunpack.c.l.b16 %v267
        %v345 = vunpack.c.h.b16 %v267
        %v346 = vunpack.c.l.b16 %v268
        %v347 = vunpack.c.h.b16 %v268
        %v348 = vunpack.c.l.b16 %v269
        %v349 = vunpack.c.h.b16 %v269
        %v350 = vpack.c.b16 %v320, %v318
        %v351 = vpack.c.b16 %v321, %v319
        %v352 = vpack.c.b16 %v324, %v322
        %v353 = vpack.c.b16 %v325, %v323
        %v354 = vpack.c.b16 %v328, %v326
        %v355 = vpack.c.b16 %v329, %v327
        %v356 = vpack.c.b16 %v332, %v330
        %v357 = vpack.c.b16 %v333, %v331
        %v358 = vpack.c.b16 %v336, %v334
        %v359 = vpack.c.b16 %v337, %v335
        %v360 = vpack.c.b16 %v340, %v338
        %v361 = vpack.c.b16 %v341, %v339
        %v362 = vpack.c.b16 %v344, %v342
        %v363 = vpack.c.b16 %v345, %v343
        %v364 = vpack.c.b16 %v348, %v346
        %v365 = vpack.c.b16 %v349, %v347
        %v414 = vunpack.c.l.b16 %v270
        %v415 = vunpack.c.l.b16 %v271
        %v416 = vunpack.c.l.b16 %v272
        %v417 = vunpack.c.l.b16 %v273
        %v418 = vunpack.c.l.b16 %v274
        %v419 = vunpack.c.l.b16 %v275
        %v420 = vunpack.c.l.b16 %v276
        %v421 = vunpack.c.l.b16 %v277
        %v422 = vunpack.c.l.b16 %v278
        %v423 = vunpack.c.l.b16 %v279
        %v424 = vunpack.c.l.b16 %v280
        %v425 = vunpack.c.l.b16 %v281
        %v426 = vunpack.c.l.b16 %v282
        %v427 = vunpack.c.l.b16 %v283
        %v428 = vunpack.c.l.b16 %v284
        %v429 = vunpack.c.l.b16 %v285
        %v430 = vunpack.c.l.b16 %v286
        %v431 = vunpack.c.l.b16 %v287
        %v432 = vunpack.c.l.b16 %v288
        %v433 = vunpack.c.l.b16 %v289
        %v434 = vunpack.c.l.b16 %v290
        %v435 = vunpack.c.l.b16 %v291
        %v436 = vunpack.c.l.b16 %v292
        %v437 = vunpack.c.l.b16 %v293
        %v438 = vunpack.c.l.b16 %v294
        %v439 = vunpack.c.l.b16 %v295
        %v440 = vunpack.c.l.b16 %v296
        %v441 = vunpack.c.l.b16 %v297
        %v442 = vunpack.c.l.b16 %v298
        %v443 = vunpack.c.l.b16 %v299
        %v444 = vunpack.c.l.b16 %v300
        %v445 = vunpack.c.l.b16 %v301
        %v446 = vpack.c.b16 %v415, %v414
        %v447 = vpack.c.b16 %v417, %v416
        %v448 = vpack.c.b16 %v419, %v418
        %v449 = vpack.c.b16 %v421, %v420
        %v450 = vpack.c.b16 %v423, %v422
        %v451 = vpack.c.b16 %v425, %v424
        %v452 = vpack.c.b16 %v427, %v426
        %v453 = vpack.c.b16 %v429, %v428
        %v454 = vpack.c.b16 %v431, %v430
        %v455 = vpack.c.b16 %v433, %v432
        %v456 = vpack.c.b16 %v435, %v434
        %v457 = vpack.c.b16 %v437, %v436
        %v458 = vpack.c.b16 %v439, %v438
        %v459 = vpack.c.b16 %v441, %v440
        %v460 = vpack.c.b16 %v443, %v442
        %v461 = vpack.c.b16 %v445, %v444
        %478 = vmatpush.bf16.msra.mxu0 %v453
        %479 = vmatpush.bf16.msra.mxu0 %v452
        %480 = vmatpush.bf16.msra.mxu0 %v451
        %481 = vmatpush.bf16.msra.mxu0 %v450
        %482 = vmatpush.bf16.msra.mxu0 %v449
        %483 = vmatpush.bf16.msra.mxu0 %v448
        %484 = vmatpush.bf16.msra.mxu0 %v447
        %485 = vmatpush.bf16.msra.mxu0 %v446
        %486 = vmatmul.bf16.gmra.mxu0 %v350
        %v487 = vpop.f32.mrf.mxu0
        %v488 = vadd.f32 0.0, %v487
        %v489 = vpop.f32.mrf.mxu0
        %v490 = vadd.f32 0.0, %v489
        %491 = vmatmul.bf16.gmra.mxu0 %v352
        %v492 = vpop.f32.mrf.mxu0
        %v493 = vadd.f32 0.0, %v492
        %v494 = vpop.f32.mrf.mxu0
        %v495 = vadd.f32 0.0, %v494
        %496 = vmatmul.bf16.gmra.mxu0 %v354
        %v497 = vpop.f32.mrf.mxu0
        %v498 = vadd.f32 0.0, %v497
        %v499 = vpop.f32.mrf.mxu0
        %v500 = vadd.f32 0.0, %v499
        %501 = vmatmul.bf16.gmra.mxu0 %v356
        %v502 = vpop.f32.mrf.mxu0
        %v503 = vadd.f32 0.0, %v502
        %v504 = vpop.f32.mrf.mxu0
        %v505 = vadd.f32 0.0, %v504
        %506 = vmatmul.bf16.gmra.mxu0 %v358
        %v507 = vpop.f32.mrf.mxu0
        %v508 = vadd.f32 0.0, %v507
        %v509 = vpop.f32.mrf.mxu0
        %v510 = vadd.f32 0.0, %v509
        %511 = vmatmul.bf16.gmra.mxu0 %v360
        %v512 = vpop.f32.mrf.mxu0
        %v513 = vadd.f32 0.0, %v512
        %v514 = vpop.f32.mrf.mxu0
        %v515 = vadd.f32 0.0, %v514
        %516 = vmatmul.bf16.gmra.mxu0 %v362
        %v517 = vpop.f32.mrf.mxu0
        %v518 = vadd.f32 0.0, %v517
        %v519 = vpop.f32.mrf.mxu0
        %v520 = vadd.f32 0.0, %v519
        %521 = vmatmul.bf16.gmra.mxu0 %v364
        %v522 = vpop.f32.mrf.mxu0
        %v523 = vadd.f32 0.0, %v522
        %v524 = vpop.f32.mrf.mxu0
        %v525 = vadd.f32 0.0, %v524
        %526 = vdwg.mxu0
        %527 = vmatpush.bf16.msra.mxu0 %v461
        %528 = vmatpush.bf16.msra.mxu0 %v460
        %529 = vmatpush.bf16.msra.mxu0 %v459
        %530 = vmatpush.bf16.msra.mxu0 %v458
        %531 = vmatpush.bf16.msra.mxu0 %v457
        %532 = vmatpush.bf16.msra.mxu0 %v456
        %533 = vmatpush.bf16.msra.mxu0 %v455
        %534 = vmatpush.bf16.msra.mxu0 %v454
        %535 = vmatmul.bf16.gmra.mxu0 %v351
        %v536 = vpop.f32.mrf.mxu0
        %v537 = vadd.f32 %v488, %v536
        %v538 = vpop.f32.mrf.mxu0
        %v539 = vadd.f32 %v490, %v538
        %540 = vmatmul.bf16.gmra.mxu0 %v353
        %v541 = vpop.f32.mrf.mxu0
        %v542 = vadd.f32 %v493, %v541
        %v543 = vpop.f32.mrf.mxu0
        %v544 = vadd.f32 %v495, %v543
        %545 = vmatmul.bf16.gmra.mxu0 %v355
        %v546 = vpop.f32.mrf.mxu0
        %v547 = vadd.f32 %v498, %v546
        %v548 = vpop.f32.mrf.mxu0
        %v549 = vadd.f32 %v500, %v548
        %550 = vmatmul.bf16.gmra.mxu0 %v357
        %v551 = vpop.f32.mrf.mxu0
        %v552 = vadd.f32 %v503, %v551
        %v553 = vpop.f32.mrf.mxu0
        %v554 = vadd.f32 %v505, %v553
        %555 = vmatmul.bf16.gmra.mxu0 %v359
        %v556 = vpop.f32.mrf.mxu0
        %v557 = vadd.f32 %v508, %v556
        %v558 = vpop.f32.mrf.mxu0
        %v559 = vadd.f32 %v510, %v558
        %560 = vmatmul.bf16.gmra.mxu0 %v361
        %v561 = vpop.f32.mrf.mxu0
        %v562 = vadd.f32 %v513, %v561
        %v563 = vpop.f32.mrf.mxu0
        %v564 = vadd.f32 %v515, %v563
        %565 = vmatmul.bf16.gmra.mxu0 %v363
        %v566 = vpop.f32.mrf.mxu0
        %v567 = vadd.f32 %v518, %v566
        %v568 = vpop.f32.mrf.mxu0
        %v569 = vadd.f32 %v520, %v568
        %570 = vmatmul.bf16.gmra.mxu0 %v365
        %v571 = vpop.f32.mrf.mxu0
        %v572 = vadd.f32 %v523, %v571
        %v573 = vpop.f32.mrf.mxu0
        %v574 = vadd.f32 %v525, %v573
        %575 = vdwg.mxu0
        %v576 = vpack.c.bf16 %v539, %v537
        %v577 = vpack.c.bf16 %v544, %v542
        %v578 = vpack.c.bf16 %v549, %v547
        %v579 = vpack.c.bf16 %v554, %v552
        %v580 = vpack.c.bf16 %v559, %v557
        %v581 = vpack.c.bf16 %v564, %v562
        %v582 = vpack.c.bf16 %v569, %v567
        %v583 = vpack.c.bf16 %v574, %v572
        %v584 = vld [vmem:[#allocation7] sm:$0xf]
        %v585 = vld [vmem:[#allocation7 + $0x4] sm:$0xf]
        %v586 = vld [vmem:[#allocation7 + $0x8] sm:$0xf]
        %v587 = vld [vmem:[#allocation7 + $0xc] sm:$0xf]
        %v588 = vld [vmem:[#allocation7 + $0x10] sm:$0xf]
        %v589 = vld [vmem:[#allocation7 + $0x14] sm:$0xf]
        %v590 = vld [vmem:[#allocation7 + $0x18] sm:$0xf]
        %v591 = vld [vmem:[#allocation7 + $0x1c] sm:$0xf]
        %v592 = vld [vmem:[#allocation7 + $0x20] sm:$0xf]
        %v593 = vld [vmem:[#allocation7 + $0x24] sm:$0xf]
        %v594 = vld [vmem:[#allocation7 + $0x28] sm:$0xf]
        %v595 = vld [vmem:[#allocation7 + $0x2c] sm:$0xf]
        %v596 = vld [vmem:[#allocation7 + $0x30] sm:$0xf]
        %v597 = vld [vmem:[#allocation7 + $0x34] sm:$0xf]
        %v598 = vld [vmem:[#allocation7 + $0x38] sm:$0xf]
        %v599 = vld [vmem:[#allocation7 + $0x3c] sm:$0xf]
        %v600 = vld [vmem:[%s3] sm:$0x1]
        %v602 = vperm.slane %v600, 0
        %v620 = vunpack.c.l.b16 %v584
        %v621 = vunpack.c.l.b16 %v585
        %v622 = vunpack.c.l.b16 %v586
        %v623 = vunpack.c.l.b16 %v587
        %v624 = vunpack.c.l.b16 %v588
        %v625 = vunpack.c.l.b16 %v589
        %v626 = vunpack.c.l.b16 %v590
        %v627 = vunpack.c.l.b16 %v591
        %v628 = vunpack.c.l.b16 %v592
        %v629 = vunpack.c.l.b16 %v593
        %v630 = vunpack.c.l.b16 %v594
        %v631 = vunpack.c.l.b16 %v595
        %v632 = vunpack.c.l.b16 %v596
        %v633 = vunpack.c.l.b16 %v597
        %v634 = vunpack.c.l.b16 %v598
        %v635 = vunpack.c.l.b16 %v599
        %v636 = vpack.c.b16 %v621, %v620
        %v637 = vpack.c.b16 %v623, %v622
        %v638 = vpack.c.b16 %v625, %v624
        %v639 = vpack.c.b16 %v627, %v626
        %v640 = vpack.c.b16 %v629, %v628
        %v641 = vpack.c.b16 %v631, %v630
        %v642 = vpack.c.b16 %v633, %v632
        %v643 = vpack.c.b16 %v635, %v634
        %652 = vmatpush.bf16.msra.mxu0 %v643
        %653 = vmatpush.bf16.msra.mxu0 %v642
        %654 = vmatpush.bf16.msra.mxu0 %v641
        %655 = vmatpush.bf16.msra.mxu0 %v640
        %656 = vmatpush.bf16.msra.mxu0 %v639
        %657 = vmatpush.bf16.msra.mxu0 %v638
        %658 = vmatpush.bf16.msra.mxu0 %v637
        %659 = vmatpush.bf16.msra.mxu0 %v636
        %660 = vmatmul.bf16.gmra.mxu0 %v576
        %v661 = vpop.f32.mrf.mxu0
        %v662 = vadd.f32 %v602, %v661
        %v663 = vpop.f32.mrf.mxu0
        %v664 = vadd.f32 %v602, %v663
        %665 = vmatmul.bf16.gmra.mxu0 %v577
        %v666 = vpop.f32.mrf.mxu0
        %v667 = vadd.f32 %v602, %v666
        %v668 = vpop.f32.mrf.mxu0
        %v669 = vadd.f32 %v602, %v668
        %670 = vmatmul.bf16.gmra.mxu0 %v578
        %v671 = vpop.f32.mrf.mxu0
        %v672 = vadd.f32 %v602, %v671
        %v673 = vpop.f32.mrf.mxu0
        %v674 = vadd.f32 %v602, %v673
        %675 = vmatmul.bf16.gmra.mxu0 %v579
        %v676 = vpop.f32.mrf.mxu0
        %v677 = vadd.f32 %v602, %v676
        %v678 = vpop.f32.mrf.mxu0
        %v679 = vadd.f32 %v602, %v678
        %680 = vmatmul.bf16.gmra.mxu0 %v580
        %v681 = vpop.f32.mrf.mxu0
        %v682 = vadd.f32 %v602, %v681
        %v683 = vpop.f32.mrf.mxu0
        %v684 = vadd.f32 %v602, %v683
        %685 = vmatmul.bf16.gmra.mxu0 %v581
        %v686 = vpop.f32.mrf.mxu0
        %v687 = vadd.f32 %v602, %v686
        %v688 = vpop.f32.mrf.mxu0
        %v689 = vadd.f32 %v602, %v688
        %690 = vmatmul.bf16.gmra.mxu0 %v582
        %v691 = vpop.f32.mrf.mxu0
        %v692 = vadd.f32 %v602, %v691
        %v693 = vpop.f32.mrf.mxu0
        %v694 = vadd.f32 %v602, %v693
        %695 = vmatmul.bf16.gmra.mxu0 %v583
        %v696 = vpop.f32.mrf.mxu0
        %v697 = vadd.f32 %v602, %v696
        %v698 = vpop.f32.mrf.mxu0
        %v699 = vadd.f32 %v602, %v698
        %700 = vdwg.mxu0
        %v701 = vmax.f32 %v662, 0.0
        %v702 = vmax.f32 %v664, 0.0
        %v703 = vmax.f32 %v667, 0.0
        %v704 = vmax.f32 %v669, 0.0
        %v705 = vmax.f32 %v672, 0.0
        %v706 = vmax.f32 %v674, 0.0
        %v707 = vmax.f32 %v677, 0.0
        %v708 = vmax.f32 %v679, 0.0
        %v709 = vmax.f32 %v682, 0.0
        %v710 = vmax.f32 %v684, 0.0
        %v711 = vmax.f32 %v687, 0.0
        %v712 = vmax.f32 %v689, 0.0
        %v713 = vmax.f32 %v692, 0.0
        %v714 = vmax.f32 %v694, 0.0
        %v715 = vmax.f32 %v697, 0.0
        %v716 = vmax.f32 %v699, 0.0
        %717 = vst [vmem:[%s251] sm:$0xff] %v701
        %718 = vst [vmem:[%s251 + $0x8] sm:$0xff] %v702
        %719 = vst [vmem:[%s251 + $0x10] sm:$0xff] %v703
        %720 = vst [vmem:[%s251 + $0x18] sm:$0xff] %v704
        %721 = vst [vmem:[%s251 + $0x20] sm:$0xff] %v705
        %722 = vst [vmem:[%s251 + $0x28] sm:$0xff] %v706
        %723 = vst [vmem:[%s251 + $0x30] sm:$0xff] %v707
        %724 = vst [vmem:[%s251 + $0x38] sm:$0xff] %v708
        %725 = vst [vmem:[%s251 + $0x40] sm:$0xff] %v709
        %726 = vst [vmem:[%s251 + $0x48] sm:$0xff] %v710
        %727 = vst [vmem:[%s251 + $0x50] sm:$0xff] %v711
        %728 = vst [vmem:[%s251 + $0x58] sm:$0xff] %v712
        %729 = vst [vmem:[%s251 + $0x60] sm:$0xff] %v713
        %730 = vst [vmem:[%s251 + $0x68] sm:$0xff] %v714
        %731 = vst [vmem:[%s251 + $0x70] sm:$0xff] %v715
        %732 = vst [vmem:[%s251 + $0x78] sm:$0xff] %v716
        %s733 = sand.u32 %s119, 1
        %s734 = scalar_lea.sflag [#allocation4], %s733
        %s735 = sand.u32 %s119, 1
        %s736 = smul.addr %s735, 128
        %s737 = scalar_lea.vmem [#allocation8], %s736
        // Predicated region
        $region49: #{tpu_custom_call.1} parent=35 // pred_check
          %p738 = pneg %p129
        $region50: #{tpu_custom_call.1} parent=35 // pred_check_branch
          %740 = sbr.rel (%p738) target = $region52
        $region51: #{tpu_custom_call.1} parent=35 // pred_region
          %s741 = smul.u32 16, %s22
          %743 = vsyncadd %s734, 0
          %s744 = smul.addr %s741, 8
          %s745 = scalar_lea.hbm %s4, %s744
          %s746 = sshll.u32 %s737, 4
          %s747 = int_to_ptr.vmem [resolvable:$true] %s746
          %s748 = sshll.u32 %s745, 4
          %s749 = int_to_ptr.hbm [resolvable:$true] %s748
          %754 = dma.vmem_to_hbm [thread:$0]  %s747, 2048, %s749, %s734, 128, 128, 8
        $region52: #{tpu_custom_call.1} parent=35 // pred_fallthru
          _
      $region36: #{tpu_custom_call.1} parent=5 // pred_fallthru
        _
      %p755 = scmp.le.s32.totalorder 2, %s17
      // Predicated region
      $region53: #{tpu_custom_call.1} parent=5 // pred_check
        %p756 = pneg %p755
      $region54: #{tpu_custom_call.1} parent=5 // pred_check_branch
        %758 = sbr.rel (%p756) target = $region56
      $region55: #{tpu_custom_call.1} parent=5 // pred_region
        %s759 = ssub.s32 %s17, 2
        // Predicated region
        $region57: #{tpu_custom_call.1} parent=55 // pred_check
          %p760 = pneg %p135
        $region58: #{tpu_custom_call.1} parent=55 // pred_check_branch
          %762 = sbr.rel (%p760) target = $region60
        $region59: #{tpu_custom_call.1} parent=55 // pred_region
          %s763 = sand.u32 %s120, 1
          %s764 = scalar_lea.sflag [#allocation4], %s763
          %s765 = sand.u32 %s120, 1
          %s766 = smul.addr %s765, 128
          %s767 = scalar_lea.vmem [#allocation8], %s766
          %769 = dma.done %s764, 2048
        $region60: #{tpu_custom_call.1} parent=55 // pred_fallthru
          _
      $region56: #{tpu_custom_call.1} parent=5 // pred_fallthru
        _
    $region6: #{tpu_custom_call.1} parent=1 // loop_footer
      %s21 = sadd.s32 1, %s17
    $region7: #{tpu_custom_call.1} parent=1 // loop_footer_branch
      %16 = sbr.rel target = $region3
    $region8: #{tpu_custom_call.1} parent=1 // loop_exit
      _
    %770 = vsyncpa [#allocation3], 1
    %s771 = scalar_lea.sflag [#allocation3], 1
    %772 = vsyncpa %s771, 1
    %773 = vsyncpa [#allocation6], 1
    %774 = vsyncpa [#allocation4], 1
    %s775 = scalar_lea.sflag [#allocation4], 1
    %776 = vsyncpa %s775, 1

</llo_original>
